<compile_context>
chip_gen: v7x
topology: tpu7x:2x2x1
jax: 0.10.0
libtpu: 0.0.40
codegen_flags: <defaults>
</compile_context>

<pallas_src>
import math

import jax
import jax.numpy as jnp
from jax.experimental import pallas as pl
from jax.experimental.pallas import tpu as pltpu

_LANE = 128
_SUBLANE = 8
_ALIGN = _LANE * _SUBLANE                 # 1024 elems = one full f32 vreg
_TILE_TARGET_BYTES = 6 * 1024 * 1024      # ~6 MiB input tiles (4-8 MiB sweet spot)
_VMEM_LIMIT_BYTES = 48 * 1024 * 1024      # worst case 2*in+2*out+acc ~36 MiB < 48 < 64 (v7x)


def _acc_out_dtypes(dtype):
    """(accumulation dtype, output dtype) for a given input dtype."""
    dtype = jnp.dtype(dtype)
    if jnp.issubdtype(dtype, jnp.floating):
        acc = jnp.dtype(jnp.float32) if dtype.itemsize < 4 else dtype
        return acc, dtype
    if dtype == jnp.dtype(jnp.bool_):
        return jnp.dtype(jnp.int32), jnp.dtype(jnp.int32)
    if jnp.issubdtype(dtype, jnp.signedinteger) and dtype.itemsize < 4:
        return jnp.dtype(jnp.int32), jnp.dtype(jnp.int32)
    if jnp.issubdtype(dtype, jnp.unsignedinteger) and dtype.itemsize < 4:
        return jnp.dtype(jnp.uint32), jnp.dtype(jnp.uint32)
    return dtype, dtype


def _choose_layout(aligned_total):
    """Pick (rows, cols): cols a wide multiple of 128, rows a multiple of 8."""
    for cols in (2048, 1024, 512, 256, 128):
        if aligned_total % cols == 0 and (aligned_total // cols) % _SUBLANE == 0:
            return aligned_total // cols, cols
    # aligned_total is a multiple of 1024, so this is always valid.
    return aligned_total // _LANE, _LANE


def _round_up(x, m):
    return -(-x // m) * m


def _pick_row_tile(rows, cols, itemsize):
    """Row-tile size: multiple of 8, ~_TILE_TARGET_BYTES, >=2 tiles when possible."""
    tr = max(_SUBLANE, (_TILE_TARGET_BYTES // (cols * itemsize)) // _SUBLANE * _SUBLANE)
    tr = min(tr, _round_up(rows, _SUBLANE))
    # Guarantee >=2 row tiles when rows allow it, so the "parallel" row axis
    # actually shards across both TensorCores on v7x.
    if rows > _SUBLANE and pl.cdiv(rows, tr) < 2:
        tr = max(_SUBLANE, _round_up(pl.cdiv(rows, 2), _SUBLANE))
    return tr


def _agg_sum_kernel(x_ref, o_ref):
    # x_ref: (TR, cols) tile of the i-th stacked tensor (stack dim squeezed).
    # o_ref: (TR, cols) output tile.  Its block index ignores the reduction
    # axis, so it stays resident in VMEM across all N steps: accumulate into it
    # directly (no scratch, no final copy).  Used when acc dtype == out dtype.
    @pl.when(pl.program_id(1) == 0)
    def _():
        o_ref[...] = jnp.zeros_like(o_ref)

    o_ref[...] += x_ref[...].astype(o_ref.dtype)


def _agg_sum_kernel_acc(x_ref, o_ref, acc_ref):
    # Variant for sub-32-bit float inputs: accumulate in an f32 VMEM scratch and
    # cast to the output dtype once, at the final reduction step.
    i = pl.program_id(1)

    @pl.when(i == 0)
    def _():
        acc_ref[...] = jnp.zeros_like(acc_ref)

    acc_ref[...] += x_ref[...].astype(acc_ref.dtype)

    @pl.when(i == pl.num_programs(1) - 1)
    def _():
        o_ref[...] = acc_ref[...].astype(o_ref.dtype)


def _agg_sum_aligned(x3d, acc_dtype, out_dtype):
    """Sum a (N, rows, cols) slab over axis 0 with the streaming Pallas kernel."""
    n, rows, cols = x3d.shape
    itemsize = jnp.dtype(x3d.dtype).itemsize
    tr = _pick_row_tile(rows, cols, itemsize)
    grid = (pl.cdiv(rows, tr), n)

    needs_scratch = jnp.dtype(acc_dtype) != jnp.dtype(out_dtype)
    kernel = _agg_sum_kernel_acc if needs_scratch else _agg_sum_kernel
    scratch = [pltpu.VMEM((tr, cols), acc_dtype)] if needs_scratch else []

    return pl.pallas_call(
        kernel,
        out_shape=jax.ShapeDtypeStruct((rows, cols), out_dtype),
        grid_spec=pltpu.PrefetchScalarGridSpec(
            num_scalar_prefetch=0,
            grid=grid,
            in_specs=[
                pl.BlockSpec((pl.Squeezed(), tr, cols), lambda r, i: (i, r, 0))
            ],
            out_specs=pl.BlockSpec((tr, cols), lambda r, i: (r, 0)),
            scratch_shapes=scratch,
        ),
        compiler_params=pltpu.CompilerParams(
            dimension_semantics=("parallel", "arbitrary"),
            vmem_limit_bytes=_VMEM_LIMIT_BYTES,
        ),
    )(x3d)


@jax.jit
def agg_tensors_sum(stacked_x: jax.Array) -> jax.Array:
    """Sum a stacked tensor over its leading (stack) axis. shape (N, *rest) -> rest."""
    n = stacked_x.shape[0]
    rest_shape = stacked_x.shape[1:]
    total = math.prod(rest_shape) if rest_shape else 1
    acc_dtype, out_dtype = _acc_out_dtypes(stacked_x.dtype)

    if total == 0:
        return jnp.zeros(rest_shape, out_dtype)

    flat = stacked_x.reshape(n, total)          # contiguous reshape: free
    aligned = (total // _ALIGN) * _ALIGN
    tail = total - aligned

    parts = []
    if aligned:
        main = flat if tail == 0 else flat[:, :aligned]
        rows, cols = _choose_layout(aligned)
        out_main = _agg_sum_aligned(main.reshape(n, rows, cols), acc_dtype, out_dtype)
        parts.append(out_main.reshape(aligned))
    if tail:
        # <1024 elements per stacked tensor: a tiny XLA reduction is far cheaper
        # than padding/slicing the whole stack (which would ~double HBM traffic).
        tail_sum = jnp.sum(flat[:, aligned:].astype(acc_dtype), axis=0)
        parts.append(tail_sum.astype(out_dtype))

    out_flat = parts[0] if len(parts) == 1 else jnp.concatenate(parts)
    return out_flat.reshape(rest_shape)


if __name__ == "__main__":
    key = jax.random.PRNGKey(0)
    k1, k2, k3, k4 = jax.random.split(key, 4)

    # 1) NCHW stack, 1024-aligned trailing size (2*4*16*16 = 2048): copy-free path.
    N, B, C, H, W = 4, 2, 4, 16, 16
    x1 = jax.random.normal(k1, (N, B, C, H, W), dtype=jnp.float32)
    out1 = agg_tensors_sum(x1)
    jax.block_until_ready(out1)
    ref1 = jnp.sum(x1, axis=0)
    assert out1.shape == ref1.shape == (B, C, H, W)
    assert jnp.allclose(out1, ref1, atol=1e-5, rtol=1e-5)

    # 2) bf16 input: exercises the f32 VMEM scratch accumulator variant.
    x2 = jax.random.normal(k2, (3, 2, 4, 16, 16), dtype=jnp.bfloat16)
    out2 = agg_tensors_sum(x2)
    jax.block_until_ready(out2)
    ref2 = jnp.sum(x2.astype(jnp.float32), axis=0)
    assert out2.dtype == jnp.bfloat16 and out2.shape == (2, 4, 16, 16)
    assert jnp.allclose(out2.astype(jnp.float32), ref2, atol=1e-1, rtol=2e-2)

    # 3) Unaligned trailing size (2*3*17*13 = 1326): aligned-prefix kernel + tail sum.
    x3 = jax.random.normal(k3, (4, 2, 3, 17, 13), dtype=jnp.float32)
    out3 = agg_tensors_sum(x3)
    jax.block_until_ready(out3)
    ref3 = jnp.sum(x3, axis=0)
    assert out3.shape == ref3.shape == (2, 3, 17, 13)
    assert jnp.allclose(out3, ref3, atol=1e-5, rtol=1e-5)

    # 4) int8 input: accumulates and returns int32 (PyTorch promotes integral sums).
    x4 = jax.random.randint(k4, (5, 2, 4, 16, 16), -4, 4, dtype=jnp.int8)
    out4 = agg_tensors_sum(x4)
    jax.block_until_ready(out4)
    ref4 = jnp.sum(x4.astype(jnp.int32), axis=0)
    assert out4.dtype == jnp.int32
    assert jnp.array_equal(out4, ref4)

    print("KERNEL_OK")
</pallas_src>

<mosaic_0001>
module attributes {stable_mosaic.version = 11 : i64} {
  func.func @_agg_sum_kernel(%arg0: i32, %arg1: i32, %arg2: memref<1x8x256xf32, #tpu.memory_space<vmem>>, %arg3: memref<8x256xf32, #tpu.memory_space<vmem>>) attributes {dimension_semantics = [#tpu.dimension_semantics<parallel>, #tpu.dimension_semantics<arbitrary>], iteration_bounds = array<i64: 1, 4>, scalar_prefetch = 0 : i64, scratch_operands = 0 : i64, tpu.core_type = #tpu.core_type<tc>, window_params = [{transform_indices = @transform_0, window_bounds = array<i64: 1, 8, 256>}, {transform_indices = @transform_1, window_bounds = array<i64: 8, 256>}]} {
    %c0_i32 = arith.constant 0 : i32
    %0 = arith.cmpi eq, %arg1, %c0_i32 : i32
    %1 = arith.extui %0 : i1 to i32
    %c0_i32_0 = arith.constant 0 : i32
    %2 = arith.cmpi ne, %1, %c0_i32_0 : i32
    scf.if %2 {
      %cst = arith.constant 0.000000e+00 : f32
      %8 = vector.broadcast %cst : f32 to vector<8x256xf32>
      %c0_7 = arith.constant 0 : index
      %c0_8 = arith.constant 0 : index
      %9 = vector.load %arg3[%c0_7, %c0_8] : memref<8x256xf32, #tpu.memory_space<vmem>>, vector<8x256xf32>
      tpu.vector_store %arg3[%c0_7, %c0_8], %8 {strides = array<i32>} : memref<8x256xf32, #tpu.memory_space<vmem>>, vector<8x256xf32>,
    } else {
    }
    %c0 = arith.constant 0 : index
    %c0_1 = arith.constant 0 : index
    %3 = vector.load %arg3[%c0, %c0_1] : memref<8x256xf32, #tpu.memory_space<vmem>>, vector<8x256xf32>
    %c0_2 = arith.constant 0 : index
    %c0_3 = arith.constant 0 : index
    %c0_4 = arith.constant 0 : index
    %4 = vector.load %arg2[%c0_2, %c0_3, %c0_4] : memref<1x8x256xf32, #tpu.memory_space<vmem>>, vector<1x8x256xf32>
    %5 = vector.shape_cast %4 : vector<1x8x256xf32> to vector<8x256xf32>
    %6 = arith.addf %3, %5 : vector<8x256xf32>
    %c0_5 = arith.constant 0 : index
    %c0_6 = arith.constant 0 : index
    %7 = vector.load %arg3[%c0_5, %c0_6] : memref<8x256xf32, #tpu.memory_space<vmem>>, vector<8x256xf32>
    tpu.vector_store %arg3[%c0_5, %c0_6], %6 {strides = array<i32>} : memref<8x256xf32, #tpu.memory_space<vmem>>, vector<8x256xf32>,
    return
  }
  func.func @transform_0(%arg0: i32, %arg1: i32) -> (i32, i32, i32) {
    %c0_i32 = arith.constant 0 : i32
    %c0_i32_0 = arith.constant 0 : i32
    return %arg1, %arg0, %c0_i32 : i32, i32, i32
  }
  func.func @transform_1(%arg0: i32, %arg1: i32) -> (i32, i32) {
    %c0_i32 = arith.constant 0 : i32
    %c0_i32_0 = arith.constant 0 : i32
    return %arg0, %c0_i32 : i32, i32
  }
}

</mosaic_0001>

<llo_original>
// kernel: agg_tensors_sum.1
$region0: #{agg_tensors_sum.1}
  #allocation0 [shape = 'u32[]', space=smem, size = 0x4, offset = 0x4, fixed_abs, tag = 'smem constant byte address 0x4 - core index']
  #allocation1 [shape = 'u32[144,128]{1,0:T(1,128)}', space=vmem, size = 0x12000, scoped, tag = 'internal scratch']
  %s0 = inlined_call_operand.vmem [shape: f32[4,8,256], index: 0, kind: input, shape index: {}]
  %s1 = inlined_call_operand.vmem [shape: f32[8,256], index: 1, kind: output, shape index: {}]
  %s2 = sld [smem:[#allocation0]]
  $region41: #{agg_tensors_sum.1} parent=0
    _
  %s4 = ssub.s32 1, %s2
  %s5 = scalar_select 0, %s4, %s2
  loop: start=0, step=1, limit=6
  $region2: #{agg_tensors_sum.1} parent=0 // loop_pre_header
    _
  $region3: #{agg_tensors_sum.1} parent=0 // loop_header
    %s7 = sphi 0, %s11
    %p8 = scmp.ge.s32.totalorder %s7, 6
    %s14 = sphi 0, %s26
    %s15 = sphi 0, %s22
    %s16 = sphi 0, %s14
    %s17 = sphi 0, %s15
    %s18 = sphi 0, %s16
    %s19 = sphi 0, %s17
    %s31 = sphi 0, %s33
    %s34 = sphi 0, %s31
    %s35 = sphi 0, %s34
    %s51 = sphi 0, %s35
    %s57 = sphi 0, %s59
    %s60 = sphi 0, %s57
    %s61 = sphi 0, %s60
    %s77 = sphi 0, %s61
  $region4: #{agg_tensors_sum.1} parent=0 // loop_header_branch
    %10 = sbr.rel (%p8) target = $region8
  $region5: #{agg_tensors_sum.1} parent=0 // loop_body
    %s12 = ssub.s32 %s7, 1
    %s13 = ssub.s32 %s7, 2
    %s20 = sadd.s32 1, %s15
    %p21 = scmp.ge.s32.totalorder %s20, 4
    %s22 = scalar_select %p21, 0, %s20
    %s23 = sadd.s32 1, %s14
    %s24 = scalar_select %p21, %s23, %s14
    %p25 = scmp.ge.s32.totalorder %s24, 1
    %s26 = scalar_select %p25, 0, %s24
    %s27 = ssub.s32 %s15, %s22
    %s28 = ssub.s32 %s14, %s26
    %s29 = sor.u32 %s27, %s28
    %p30 = scmp.eq.s32.totalorder %s29, 0
    %s32 = sadd.s32 %s31, 1
    %s33 = scalar_select %p30, %s31, %s32
    %p36 = pneg %p30
    %p37 = scmp.eq.s32.totalorder %s7, 3
    %p38 = por %p36, %p37
    %p39 = scmp.ne.s32.totalorder %s31, %s34
    %p40 = scmp.eq.s32.totalorder %s7, 0
    %p41 = por %p39, %p40
    %p42 = scmp.ne.s32.totalorder %s31, %s34
    %p43 = scmp.eq.s32.totalorder %s12, 3
    %p44 = por %p42, %p43
    %p45 = scmp.ne.s32.totalorder %s34, %s35
    %p46 = scmp.eq.s32.totalorder %s12, 0
    %p47 = por %p45, %p46
    %p48 = scmp.ne.s32.totalorder %s34, %s35
    %p49 = scmp.eq.s32.totalorder %s13, 3
    %p50 = por %p48, %p49
    %p52 = scmp.ne.s32.totalorder %s35, %s51
    %p53 = scmp.eq.s32.totalorder %s13, 0
    %p54 = por %p52, %p53
    %s55 = ssub.s32 %s14, %s26
    %p56 = scmp.eq.s32.totalorder %s55, 0
    %s58 = sadd.s32 %s57, 1
    %s59 = scalar_select %p56, %s57, %s58
    %p62 = pneg %p56
    %p63 = scmp.eq.s32.totalorder %s7, 3
    %p64 = por %p62, %p63
    %p65 = scmp.ne.s32.totalorder %s57, %s60
    %p66 = scmp.eq.s32.totalorder %s7, 0
    %p67 = por %p65, %p66
    %p68 = scmp.ne.s32.totalorder %s57, %s60
    %p69 = scmp.eq.s32.totalorder %s12, 3
    %p70 = por %p68, %p69
    %p71 = scmp.ne.s32.totalorder %s60, %s61
    %p72 = scmp.eq.s32.totalorder %s12, 0
    %p73 = por %p71, %p72
    %p74 = scmp.ne.s32.totalorder %s60, %s61
    %p75 = scmp.eq.s32.totalorder %s13, 3
    %p76 = por %p74, %p75
    %p78 = scmp.ne.s32.totalorder %s61, %s77
    %p79 = scmp.eq.s32.totalorder %s13, 0
    %p80 = por %p78, %p79
    %p81 = scmp.le.s32.totalorder 1, %s7
    %p82 = scmp.lt.s32.totalorder %s7, 5
    %p83 = pnand %p81, %p82
    %p84 = pneg %p83
    // Predicated region
    $region9: #{agg_tensors_sum.1} parent=5 // pred_check
      _
    $region10: #{agg_tensors_sum.1} parent=5 // pred_check_branch
      %86 = sbr.rel (%p83) target = $region12
    $region11: #{agg_tensors_sum.1} parent=5 // pred_region
      %s87 = ssub.s32 %s7, 1
    $region12: #{agg_tensors_sum.1} parent=5 // pred_fallthru
      _
    %p88 = scmp.lt.s32.totalorder %s7, 4
    // Predicated region
    $region13: #{agg_tensors_sum.1} parent=5 // pred_check
      %p89 = pneg %p88
    $region14: #{agg_tensors_sum.1} parent=5 // pred_check_branch
      %91 = sbr.rel (%p89) target = $region16
    $region15: #{agg_tensors_sum.1} parent=5 // pred_region
      // Predicated region
      $region17: #{agg_tensors_sum.1} parent=15 // pred_check
        %p92 = pneg %p41
      $region18: #{agg_tensors_sum.1} parent=15 // pred_check_branch
        %94 = sbr.rel (%p92) target = $region20
      $region19: #{agg_tensors_sum.1} parent=15 // pred_region
        %p95 = scmp.lt.s32.totalorder %s15, 3
        %s96 = scalar_select %p95, %s15, 3
        %p97 = scmp.lt.s32.totalorder %s14, 0
        %s98 = scalar_select %p97, %s14, 0
        %s99 = smul.addr %s98, 2
        %s100 = smul.addr %s96, 2
        %s101 = sadd.s32 %s99, %s100
        %s102 = smul.addr %s101, 8
        %s103 = scalar_lea.vmem %s0, %s102
      $region20: #{agg_tensors_sum.1} parent=15 // pred_fallthru
        _
    $region16: #{agg_tensors_sum.1} parent=5 // pred_fallthru
      _
    %p104 = scmp.le.s32.totalorder 1, %s7
    %p105 = scmp.lt.s32.totalorder %s7, 5
    %p106 = pnand %p104, %p105
    %p107 = pneg %p106
    // Predicated region
    $region21: #{agg_tensors_sum.1} parent=5 // pred_check
      _
    $region22: #{agg_tensors_sum.1} parent=5 // pred_check_branch
      %109 = sbr.rel (%p106) target = $region24
    $region23: #{agg_tensors_sum.1} parent=5 // pred_region
      %s110 = ssub.s32 %s7, 1
      %p111 = scmp.lt.s32.totalorder %s17, 3
      %s112 = scalar_select %p111, %s17, 3
      %p113 = scmp.lt.s32.totalorder %s16, 0
      %s114 = scalar_select %p113, %s16, 0
      %s115 = smul.addr %s114, 2
      %s116 = smul.addr %s112, 2
      %s117 = sadd.s32 %s115, %s116
      %s118 = smul.addr %s117, 8
      %s119 = scalar_lea.vmem %s0, %s118
      %p120 = pneg %p47
      %p121 = pneg %p44
      %p122 = pneg %p73
      %p123 = pneg %p70
      %p124 = scmp.lt.s32.totalorder %s16, 0
      %s125 = scalar_select %p124, %s16, 0
      %s126 = smul.addr %s125, 2
      %s127 = smul.addr %s126, 8
      %s128 = scalar_lea.vmem %s1, %s127
      %p129 = scmp.lt.s32.totalorder %s17, 3
      %s130 = scalar_select %p129, %s17, 3
      %p131 = scmp.lt.s32.totalorder %s16, 0
      %s132 = scalar_select %p131, %s16, 0
      %s133 = smul.addr %s132, 2
      %s134 = smul.addr %s130, 2
      %s135 = sadd.s32 %s133, %s134
      %s136 = smul.addr %s135, 8
      %s137 = scalar_lea.vmem %s0, %s136
      %p138 = scmp.lt.s32.totalorder %s16, 0
      %s139 = scalar_select %p138, %s16, 0
      %s140 = smul.addr %s139, 2
      %s141 = smul.addr %s140, 8
      %s142 = scalar_lea.vmem %s1, %s141
      %p143 = scmp.eq.s32.totalorder %s17, 0
      // Predicated region
      $region25: #{agg_tensors_sum.1} parent=23 // pred_check
        %p144 = pneg %p143
      $region26: #{agg_tensors_sum.1} parent=23 // pred_check_branch
        %146 = sbr.rel (%p144) target = $region28
      $region27: #{agg_tensors_sum.1} parent=23 // pred_region
        %147 = vst [vmem:[%s142] sm:$0xff] 0.0
        %148 = vst [vmem:[%s142 + $0x8] sm:$0xff] 0.0
      $region28: #{agg_tensors_sum.1} parent=23 // pred_fallthru
        _
      %v149 = vld [vmem:[%s142] sm:$0xff]
      %v150 = vld [vmem:[%s142 + $0x8] sm:$0xff]
      %v151 = vld [vmem:[%s137] sm:$0xff]
      %v152 = vld [vmem:[%s137 + $0x8] sm:$0xff]
      %v153 = vadd.f32 %v149, %v151
      %v154 = vadd.f32 %v150, %v152
      %155 = vst [vmem:[%s142] sm:$0xff] %v153
      %156 = vst [vmem:[%s142 + $0x8] sm:$0xff] %v154
      %p157 = scmp.lt.s32.totalorder %s16, 0
      %s158 = scalar_select %p157, %s16, 0
      %s159 = smul.addr %s158, 2
      %s160 = smul.addr %s159, 8
      %s161 = scalar_lea.vmem %s1, %s160
      // Predicated region
      $region29: #{agg_tensors_sum.1} parent=23 // pred_check
        %p162 = pneg %p70
      $region30: #{agg_tensors_sum.1} parent=23 // pred_check_branch
        %164 = sbr.rel (%p162) target = $region32
      $region31: #{agg_tensors_sum.1} parent=23 // pred_region
        _
      $region32: #{agg_tensors_sum.1} parent=23 // pred_fallthru
        _
      // Predicated region
      $region33: #{agg_tensors_sum.1} parent=23 // pred_check
        %p165 = pneg %p70
      $region34: #{agg_tensors_sum.1} parent=23 // pred_check_branch
        %167 = sbr.rel (%p165) target = $region36
      $region35: #{agg_tensors_sum.1} parent=23 // pred_region
        %p168 = scmp.lt.s32.totalorder %s16, 0
        %s169 = scalar_select %p168, %s16, 0
        %s170 = smul.addr %s169, 2
        %s171 = smul.addr %s170, 8
        %s172 = scalar_lea.vmem %s1, %s171
      $region36: #{agg_tensors_sum.1} parent=23 // pred_fallthru
        _
    $region24: #{agg_tensors_sum.1} parent=5 // pred_fallthru
      _
    %p173 = scmp.le.s32.totalorder 2, %s7
    // Predicated region
    $region37: #{agg_tensors_sum.1} parent=5 // pred_check
      %p174 = pneg %p173
    $region38: #{agg_tensors_sum.1} parent=5 // pred_check_branch
      %176 = sbr.rel (%p174) target = $region40
    $region39: #{agg_tensors_sum.1} parent=5 // pred_region
      %s177 = ssub.s32 %s7, 2
    $region40: #{agg_tensors_sum.1} parent=5 // pred_fallthru
      _
  $region6: #{agg_tensors_sum.1} parent=0 // loop_footer
    %s11 = sadd.s32 1, %s7
  $region7: #{agg_tensors_sum.1} parent=0 // loop_footer_branch
    %6 = sbr.rel target = $region3
  $region8: #{agg_tensors_sum.1} parent=0 // loop_exit
    _

</llo_original>
